<compile_context>
chip_gen: v7x
topology: tpu7x:2x2x1
jax: 0.10.0
libtpu: 0.0.40
codegen_flags: <defaults>
</compile_context>

<pallas_src>
import functools

import jax
import jax.numpy as jnp
from jax.experimental import pallas as pl
from jax.experimental.pallas import tpu as pltpu


def _round_up(x: int, m: int) -> int:
    return ((x + m - 1) // m) * m


def _generator_kernel(xz_ref,
                      w1_ref, b1_ref,
                      w2_ref, b2_ref,
                      w3_ref, b3_ref,
                      out_ref, *, features_size):
    """One batch tile: 3-layer MLP (relu/relu/sigmoid) on lane-dense [feat||z],
    then elementwise max with the feature half (dropout = identity at eval)."""
    xz = xz_ref[...]                                        # (TB, F+Z) f32, 128 lanes

    # dense1: single K=128 matmul on the pre-concatenated input.
    h1 = jnp.dot(xz.astype(jnp.bfloat16), w1_ref[...],
                 preferred_element_type=jnp.float32)
    h1 = jnp.maximum(h1 + b1_ref[...], 0.0)                 # bias + ReLU in f32

    # dense2 + ReLU
    h2 = jnp.dot(h1.astype(jnp.bfloat16), w2_ref[...],
                 preferred_element_type=jnp.float32)
    h2 = jnp.maximum(h2 + b2_ref[...], 0.0)

    # dense3 + sigmoid
    h3 = jnp.dot(h2.astype(jnp.bfloat16), w3_ref[...],
                 preferred_element_type=jnp.float32) + b3_ref[...]
    y = jax.nn.sigmoid(h3)

    # torch.max(x, input[0]) -- features are the first F lanes of xz (f32).
    feat = xz[:, :features_size]
    # Note: F=64 (<128 lanes) -> masked output stores; acceptable since the
    # output is ~1/3 of streamed bytes and the matmuls dominate per-tile work.
    out_ref[...] = jnp.maximum(y, feat).astype(out_ref.dtype)


def _choose_tiling(B: int, batch_tile: int):
    """Balanced batch tiles: pad B only up to a multiple of 8, never to a
    whole batch_tile. Once there is enough work, use >=2 tiles (v7x megacore)."""
    num_tiles = pl.cdiv(B, batch_tile)
    if B >= 2048:
        num_tiles = max(num_tiles, 2)
    TB = _round_up(pl.cdiv(B, num_tiles), 8)
    B_pad = TB * num_tiles
    return TB, B_pad, num_tiles


@functools.partial(jax.jit, static_argnames=("batch_tile",))
def generator_forward(features, z, params, *, batch_tile=2048):
    """features: (B, F) f32, z: (B, Z) f32. Returns (B, F) f32."""
    B, F = features.shape
    Z = z.shape[1]
    w1, b1 = params["w1"], params["b1"]
    w2, b2 = params["w2"], params["b2"]
    w3, b3 = params["w3"], params["b3"]
    H1 = w1.shape[1]
    H2 = w2.shape[1]

    TB, B_pad, num_tiles = _choose_tiling(B, batch_tile)

    # Lane-dense streamed input: feat||z as one (B, F+Z) = (B, 128) array.
    xz = jnp.concatenate([features, z], axis=1)
    if B_pad != B:
        xz = jnp.pad(xz, ((0, B_pad - B), (0, 0)))

    grid = (num_tiles,)

    # Activation tiles move per grid step; weights/biases are resident
    # (constant index_map -> loaded once, not re-DMA'd per tile).
    tile_map = lambda i: (i, 0)
    const_map = lambda i: (0, 0)
    in_specs = [
        pl.BlockSpec((TB, F + Z), tile_map),    # feat||z (lane-dense)
        pl.BlockSpec((F + Z, H1), const_map),   # w1
        pl.BlockSpec((1, H1), const_map),       # b1
        pl.BlockSpec((H1, H2), const_map),      # w2
        pl.BlockSpec((1, H2), const_map),       # b2
        pl.BlockSpec((H2, F), const_map),       # w3
        pl.BlockSpec((1, F), const_map),        # b3
    ]
    out_specs = pl.BlockSpec((TB, F), tile_map)

    weight_bytes = ((F + Z) * H1 + H1 * H2 + H2 * F) * 2 + (H1 + H2 + F) * 4
    cost = pl.CostEstimate(
        flops=2 * B_pad * ((F + Z) * H1 + H1 * H2 + H2 * F),
        transcendentals=B_pad * F,
        bytes_accessed=B_pad * (F + Z) * 4 + B_pad * F * 4 + weight_bytes,
    )

    kernel = functools.partial(_generator_kernel, features_size=F)

    out = pl.pallas_call(
        kernel,
        out_shape=jax.ShapeDtypeStruct((B_pad, F), jnp.float32),
        grid_spec=pltpu.PrefetchScalarGridSpec(
            num_scalar_prefetch=0,
            grid=grid,
            in_specs=in_specs,
            out_specs=out_specs,
        ),
        compiler_params=pltpu.CompilerParams(
            dimension_semantics=("parallel",),   # v7x: shard batch over 2 TCs
            vmem_limit_bytes=32 * 1024 * 1024,   # safe on v5e/v6e/v7x
        ),
        cost_estimate=cost,
    )(xz, w1, b1, w2, b2, w3, b3)

    return out[:B]


def init_params(key, features_size, z_size, hidden_neurons):
    """Deterministic init mirroring nn.Linear default (uniform +/- 1/sqrt(fan_in)).

    Weights stored as (in, out); matmul weights are bfloat16 (MXU feeds),
    biases stay float32."""
    F, Z = features_size, z_size
    H1, H2 = hidden_neurons
    params = {}

    # dense1 (fan_in = F + Z)
    key, kw, kb = jax.random.split(key, 3)
    bound = 1.0 / jnp.sqrt(F + Z)
    params["w1"] = jax.random.uniform(
        kw, (F + Z, H1), jnp.float32, -bound, bound).astype(jnp.bfloat16)
    params["b1"] = jax.random.uniform(kb, (1, H1), jnp.float32, -bound, bound)

    # dense2
    key, kw, kb = jax.random.split(key, 3)
    bound = 1.0 / jnp.sqrt(H1)
    params["w2"] = jax.random.uniform(
        kw, (H1, H2), jnp.float32, -bound, bound).astype(jnp.bfloat16)
    params["b2"] = jax.random.uniform(kb, (1, H2), jnp.float32, -bound, bound)

    # dense3
    key, kw, kb = jax.random.split(key, 3)
    bound = 1.0 / jnp.sqrt(H2)
    params["w3"] = jax.random.uniform(
        kw, (H2, F), jnp.float32, -bound, bound).astype(jnp.bfloat16)
    params["b3"] = jax.random.uniform(kb, (1, F), jnp.float32, -bound, bound)
    return params


def reference_forward(features, z, params):
    """Pure-JAX reference of the PyTorch forward (eval mode), same bf16-feed /
    f32-accumulate numerics as the kernel."""
    x = jnp.concatenate([features, z], axis=1).astype(jnp.bfloat16)
    h1 = jnp.maximum(
        jnp.dot(x, params["w1"], preferred_element_type=jnp.float32)
        + params["b1"], 0.0)
    h2 = jnp.maximum(
        jnp.dot(h1.astype(jnp.bfloat16), params["w2"],
                preferred_element_type=jnp.float32) + params["b2"], 0.0)
    y = jax.nn.sigmoid(
        jnp.dot(h2.astype(jnp.bfloat16), params["w3"],
                preferred_element_type=jnp.float32) + params["b3"])
    return jnp.maximum(y, features)


if __name__ == "__main__":
    # generator_parameters (small, TPU-tile-friendly sizes)
    features_size = 64
    z_size = 64
    hidden_neurons = [128, 128]

    key = jax.random.PRNGKey(0)
    key, kp = jax.random.split(key)
    params = init_params(kp, features_size, z_size, hidden_neurons)

    # (batch, batch_tile) cases:
    #  - small single-tile path
    #  - non-multiple batch with default (large) tile: single balanced tile, no waste
    #  - forced multi-tile path (grid=3, balanced TB=200) to exercise the grid
    cases = [(8, 2048), (600, 2048), (600, 256)]
    for batch, tile in cases:
        key, kf, kz = jax.random.split(key, 3)
        features = jax.random.uniform(kf, (batch, features_size), jnp.float32)
        z = jax.random.normal(kz, (batch, z_size), jnp.float32)

        out = generator_forward(features, z, params, batch_tile=tile)
        out = jax.block_until_ready(out)

        ref = reference_forward(features, z, params)
        assert out.shape == (batch, features_size)
        assert jnp.allclose(out, ref, atol=1e-3, rtol=1e-3), \
            f"mismatch vs reference at batch={batch}, tile={tile}"

    # TODO(synk): stochastic Dropout (train mode) not implemented; eval-mode
    # forward treats all dropout layers as identity.
    print("KERNEL_OK")
</pallas_src>

<mosaic_0001>
module attributes {stable_mosaic.version = 11 : i64} {
  func.func @_generator_kernel(%arg0: i32, %arg1: memref<8x128xf32, #tpu.memory_space<vmem>>, %arg2: memref<128x128xbf16, #tpu.memory_space<vmem>>, %arg3: memref<1x128xf32, #tpu.memory_space<vmem>>, %arg4: memref<128x128xbf16, #tpu.memory_space<vmem>>, %arg5: memref<1x128xf32, #tpu.memory_space<vmem>>, %arg6: memref<128x64xbf16, #tpu.memory_space<vmem>>, %arg7: memref<1x64xf32, #tpu.memory_space<vmem>>, %arg8: memref<8x64xf32, #tpu.memory_space<vmem>>) attributes {dimension_semantics = [#tpu.dimension_semantics<parallel>], iteration_bounds = array<i64: 1>, scalar_prefetch = 0 : i64, scratch_operands = 0 : i64, tpu.core_type = #tpu.core_type<tc>, window_params = [{transform_indices = @transform_0, window_bounds = array<i64: 8, 128>}, {pipeline_mode = #tpu.pipeline_mode<synchronous>, transform_indices = @transform_1, window_bounds = array<i64: 128, 128>}, {pipeline_mode = #tpu.pipeline_mode<synchronous>, transform_indices = @transform_2, window_bounds = array<i64: 1, 128>}, {pipeline_mode = #tpu.pipeline_mode<synchronous>, transform_indices = @transform_3, window_bounds = array<i64: 128, 128>}, {pipeline_mode = #tpu.pipeline_mode<synchronous>, transform_indices = @transform_4, window_bounds = array<i64: 1, 128>}, {pipeline_mode = #tpu.pipeline_mode<synchronous>, transform_indices = @transform_5, window_bounds = array<i64: 128, 64>}, {pipeline_mode = #tpu.pipeline_mode<synchronous>, transform_indices = @transform_6, window_bounds = array<i64: 1, 64>}, {transform_indices = @transform_7, window_bounds = array<i64: 8, 64>}]} {
    %c0 = arith.constant 0 : index
    %c0_0 = arith.constant 0 : index
    %0 = vector.load %arg1[%c0, %c0_0] : memref<8x128xf32, #tpu.memory_space<vmem>>, vector<8x128xf32>
    %1 = arith.truncf %0 : vector<8x128xf32> to vector<8x128xbf16>
    %c0_1 = arith.constant 0 : index
    %c0_2 = arith.constant 0 : index
    %2 = vector.load %arg2[%c0_1, %c0_2] : memref<128x128xbf16, #tpu.memory_space<vmem>>, vector<128x128xbf16>
    %cst = arith.constant dense<0.000000e+00> : vector<8x128xf32>
    %3 = tpu.matmul %1, %2, %cst {dimension_numbers = #tpu.dot_dimension_numbers<[1], [0], [0], [1], [0, 0, 1, 1], [], []>} : vector<8x128xbf16>, vector<128x128xbf16>, vector<8x128xf32> -> vector<8x128xf32>
    %c0_3 = arith.constant 0 : index
    %c0_4 = arith.constant 0 : index
    %4 = vector.load %arg3[%c0_3, %c0_4] : memref<1x128xf32, #tpu.memory_space<vmem>>, vector<1x128xf32>
    %5 = vector.broadcast %4 : vector<1x128xf32> to vector<8x128xf32>
    %6 = arith.addf %3, %5 : vector<8x128xf32>
    %cst_5 = arith.constant 0.000000e+00 : f32
    %7 = vector.broadcast %cst_5 : f32 to vector<8x128xf32>
    %8 = arith.maximumf %6, %7 : vector<8x128xf32>
    %9 = arith.truncf %8 : vector<8x128xf32> to vector<8x128xbf16>
    %c0_6 = arith.constant 0 : index
    %c0_7 = arith.constant 0 : index
    %10 = vector.load %arg4[%c0_6, %c0_7] : memref<128x128xbf16, #tpu.memory_space<vmem>>, vector<128x128xbf16>
    %cst_8 = arith.constant dense<0.000000e+00> : vector<8x128xf32>
    %11 = tpu.matmul %9, %10, %cst_8 {dimension_numbers = #tpu.dot_dimension_numbers<[1], [0], [0], [1], [0, 0, 1, 1], [], []>} : vector<8x128xbf16>, vector<128x128xbf16>, vector<8x128xf32> -> vector<8x128xf32>
    %c0_9 = arith.constant 0 : index
    %c0_10 = arith.constant 0 : index
    %12 = vector.load %arg5[%c0_9, %c0_10] : memref<1x128xf32, #tpu.memory_space<vmem>>, vector<1x128xf32>
    %13 = vector.broadcast %12 : vector<1x128xf32> to vector<8x128xf32>
    %14 = arith.addf %11, %13 : vector<8x128xf32>
    %cst_11 = arith.constant 0.000000e+00 : f32
    %15 = vector.broadcast %cst_11 : f32 to vector<8x128xf32>
    %16 = arith.maximumf %14, %15 : vector<8x128xf32>
    %17 = arith.truncf %16 : vector<8x128xf32> to vector<8x128xbf16>
    %c0_12 = arith.constant 0 : index
    %c0_13 = arith.constant 0 : index
    %18 = vector.load %arg6[%c0_12, %c0_13] : memref<128x64xbf16, #tpu.memory_space<vmem>>, vector<128x64xbf16>
    %cst_14 = arith.constant dense<0.000000e+00> : vector<8x64xf32>
    %19 = tpu.matmul %17, %18, %cst_14 {dimension_numbers = #tpu.dot_dimension_numbers<[1], [0], [0], [1], [0, 0, 1, 1], [], []>} : vector<8x128xbf16>, vector<128x64xbf16>, vector<8x64xf32> -> vector<8x64xf32>
    %c0_15 = arith.constant 0 : index
    %c0_16 = arith.constant 0 : index
    %20 = vector.load %arg7[%c0_15, %c0_16] : memref<1x64xf32, #tpu.memory_space<vmem>>, vector<1x64xf32>
    %21 = vector.broadcast %20 : vector<1x64xf32> to vector<8x64xf32>
    %22 = arith.addf %19, %21 : vector<8x64xf32>
    %23 = arith.negf %22 : vector<8x64xf32>
    %24 = math.exp %23 : vector<8x64xf32>
    %cst_17 = arith.constant 1.000000e+00 : f32
    %25 = vector.broadcast %cst_17 : f32 to vector<8x64xf32>
    %26 = arith.addf %25, %24 : vector<8x64xf32>
    %27 = arith.divf %25, %26 : vector<8x64xf32>
    %28 = vector.extract_strided_slice %0 {offsets = [0, 0], sizes = [8, 64], strides = [1, 1]} : vector<8x128xf32> to vector<8x64xf32>
    %29 = arith.maximumf %27, %28 : vector<8x64xf32>
    %c0_18 = arith.constant 0 : index
    %c0_19 = arith.constant 0 : index
    %30 = vector.load %arg8[%c0_18, %c0_19] : memref<8x64xf32, #tpu.memory_space<vmem>>, vector<8x64xf32>
    tpu.vector_store %arg8[%c0_18, %c0_19], %29 {strides = array<i32>} : memref<8x64xf32, #tpu.memory_space<vmem>>, vector<8x64xf32>,
    return
  }
  func.func @transform_0(%arg0: i32) -> (i32, i32) {
    %c0_i32 = arith.constant 0 : i32
    %c0_i32_0 = arith.constant 0 : i32
    return %arg0, %c0_i32 : i32, i32
  }
  func.func @transform_1(%arg0: i32) -> (i32, i32) {
    %c0_i32 = arith.constant 0 : i32
    %c0_i32_0 = arith.constant 0 : i32
    %c0_i32_1 = arith.constant 0 : i32
    return %c0_i32, %c0_i32_0 : i32, i32
  }
  func.func @transform_2(%arg0: i32) -> (i32, i32) {
    %c0_i32 = arith.constant 0 : i32
    %c0_i32_0 = arith.constant 0 : i32
    %c0_i32_1 = arith.constant 0 : i32
    return %c0_i32, %c0_i32_0 : i32, i32
  }
  func.func @transform_3(%arg0: i32) -> (i32, i32) {
    %c0_i32 = arith.constant 0 : i32
    %c0_i32_0 = arith.constant 0 : i32
    %c0_i32_1 = arith.constant 0 : i32
    return %c0_i32, %c0_i32_0 : i32, i32
  }
  func.func @transform_4(%arg0: i32) -> (i32, i32) {
    %c0_i32 = arith.constant 0 : i32
    %c0_i32_0 = arith.constant 0 : i32
    %c0_i32_1 = arith.constant 0 : i32
    return %c0_i32, %c0_i32_0 : i32, i32
  }
  func.func @transform_5(%arg0: i32) -> (i32, i32) {
    %c0_i32 = arith.constant 0 : i32
    %c0_i32_0 = arith.constant 0 : i32
    %c0_i32_1 = arith.constant 0 : i32
    return %c0_i32, %c0_i32_0 : i32, i32
  }
  func.func @transform_6(%arg0: i32) -> (i32, i32) {
    %c0_i32 = arith.constant 0 : i32
    %c0_i32_0 = arith.constant 0 : i32
    %c0_i32_1 = arith.constant 0 : i32
    return %c0_i32, %c0_i32_0 : i32, i32
  }
  func.func @transform_7(%arg0: i32) -> (i32, i32) {
    %c0_i32 = arith.constant 0 : i32
    %c0_i32_0 = arith.constant 0 : i32
    return %arg0, %c0_i32 : i32, i32
  }
}

</mosaic_0001>

<llo_original>
// kernel: generator_forward.1
$region0: #{generator_forward.1}
  #allocation0 [shape = 'u32[]', space=smem, size = 0x4, offset = 0x4, fixed_abs, tag = 'smem constant byte address 0x4 - core index']
  #allocation1 [shape = 'u32[144,128]{1,0:T(1,128)}', space=vmem, size = 0x12000, scoped, tag = 'internal scratch']
  %s0 = inlined_call_operand.vmem [shape: f32[8,128], index: 0, kind: input, shape index: {}]
  %s1 = inlined_call_operand.vmem [shape: bf16[128,128], index: 1, kind: input, shape index: {}]
  %s2 = inlined_call_operand.vmem [shape: f32[1,128], index: 2, kind: input, shape index: {}]
  %s3 = inlined_call_operand.vmem [shape: bf16[128,128], index: 3, kind: input, shape index: {}]
  %s4 = inlined_call_operand.vmem [shape: f32[1,128], index: 4, kind: input, shape index: {}]
  %s5 = inlined_call_operand.vmem [shape: bf16[128,64], index: 5, kind: input, shape index: {}]
  %s6 = inlined_call_operand.vmem [shape: f32[1,64], index: 6, kind: input, shape index: {}]
  %s7 = inlined_call_operand.hbm [shape: f32[8,64], index: 7, kind: output, shape index: {}]
  %s8 = sld [smem:[#allocation0]]
  $region38: #{generator_forward.1} parent=0
    _
  %s10 = ssub.s32 1, %s8
  %s11 = scalar_select 0, %s10, %s8
  $region1: #{generator_forward.1} parent=0
    #allocation2 [shape = 'u8[4096]{0}', space=vmem, size = 0x1000, scoped, tag = 'output window, operand 0, single buffered']
    #allocation3 [shape = 's32[1]{0}', space=sflag, size = 0x4, scoped, tag = 'scoped memory for generator_forward.1']
    %12 = vsyncpa [#allocation3], 0
    // Predicated region
    $region2: #{generator_forward.1} parent=1 // pred_check
      _
    $region3: #{generator_forward.1} parent=1 // pred_check_branch
      %14 = sbr.rel (0) target = $region5
    $region4: #{generator_forward.1} parent=1 // pred_region
      _
    $region5: #{generator_forward.1} parent=1 // pred_fallthru
      _
    // Predicated region
    $region6: #{generator_forward.1} parent=1 // pred_check
      _
    $region7: #{generator_forward.1} parent=1 // pred_check_branch
      %16 = sbr.rel (0) target = $region9
    $region8: #{generator_forward.1} parent=1 // pred_region
      _
    $region9: #{generator_forward.1} parent=1 // pred_fallthru
      _
    // Predicated region
    $region10: #{generator_forward.1} parent=1 // pred_check
      _
    $region11: #{generator_forward.1} parent=1 // pred_check_branch
      %18 = sbr.rel (0) target = $region13
    $region12: #{generator_forward.1} parent=1 // pred_region
      _
    $region13: #{generator_forward.1} parent=1 // pred_fallthru
      _
    // Predicated region
    $region14: #{generator_forward.1} parent=1 // pred_check
      _
    $region15: #{generator_forward.1} parent=1 // pred_check_branch
      %20 = sbr.rel (0) target = $region17
    $region16: #{generator_forward.1} parent=1 // pred_region
      _
    $region17: #{generator_forward.1} parent=1 // pred_fallthru
      _
    // Predicated region
    $region18: #{generator_forward.1} parent=1 // pred_check
      _
    $region19: #{generator_forward.1} parent=1 // pred_check_branch
      %22 = sbr.rel (0) target = $region21
    $region20: #{generator_forward.1} parent=1 // pred_region
      _
    $region21: #{generator_forward.1} parent=1 // pred_fallthru
      _
    // Predicated region
    $region22: #{generator_forward.1} parent=1 // pred_check
      _
    $region23: #{generator_forward.1} parent=1 // pred_check_branch
      %24 = sbr.rel (0) target = $region25
    $region24: #{generator_forward.1} parent=1 // pred_region
      _
    $region25: #{generator_forward.1} parent=1 // pred_fallthru
      _
    // Predicated region
    $region26: #{generator_forward.1} parent=1 // pred_check
      _
    $region27: #{generator_forward.1} parent=1 // pred_check_branch
      %26 = sbr.rel (0) target = $region29
    $region28: #{generator_forward.1} parent=1 // pred_region
      _
    $region29: #{generator_forward.1} parent=1 // pred_fallthru
      _
    %v28 = vld [vmem:[%s0] sm:$0xff]
    %v29 = vpack.c.bf16 %v28, %v28
    %v30 = vld [vmem:[%s1] sm:$0xf]
    %v31 = vld [vmem:[%s1 + $0x4] sm:$0xf]
    %v32 = vld [vmem:[%s1 + $0x8] sm:$0xf]
    %v33 = vld [vmem:[%s1 + $0xc] sm:$0xf]
    %v34 = vld [vmem:[%s1 + $0x10] sm:$0xf]
    %v35 = vld [vmem:[%s1 + $0x14] sm:$0xf]
    %v36 = vld [vmem:[%s1 + $0x18] sm:$0xf]
    %v37 = vld [vmem:[%s1 + $0x1c] sm:$0xf]
    %v38 = vld [vmem:[%s1 + $0x20] sm:$0xf]
    %v39 = vld [vmem:[%s1 + $0x24] sm:$0xf]
    %v40 = vld [vmem:[%s1 + $0x28] sm:$0xf]
    %v41 = vld [vmem:[%s1 + $0x2c] sm:$0xf]
    %v42 = vld [vmem:[%s1 + $0x30] sm:$0xf]
    %v43 = vld [vmem:[%s1 + $0x34] sm:$0xf]
    %v44 = vld [vmem:[%s1 + $0x38] sm:$0xf]
    %v45 = vld [vmem:[%s1 + $0x3c] sm:$0xf]
    %v46 = vld [vmem:[%s2] sm:$0x1]
    %v48 = vlaneseq
    %v49 = vshrl.u32 %v48, 7
    %v50 = vsub.s32 0, %v49
    %v51 = vrot.slane %v46, %v50
    %v69 = vunpack.c.l.b16 %v30
    %v70 = vunpack.c.l.b16 %v31
    %v71 = vunpack.c.l.b16 %v32
    %v72 = vunpack.c.l.b16 %v33
    %v73 = vunpack.c.l.b16 %v34
    %v74 = vunpack.c.l.b16 %v35
    %v75 = vunpack.c.l.b16 %v36
    %v76 = vunpack.c.l.b16 %v37
    %v77 = vunpack.c.l.b16 %v38
    %v78 = vunpack.c.l.b16 %v39
    %v79 = vunpack.c.l.b16 %v40
    %v80 = vunpack.c.l.b16 %v41
    %v81 = vunpack.c.l.b16 %v42
    %v82 = vunpack.c.l.b16 %v43
    %v83 = vunpack.c.l.b16 %v44
    %v84 = vunpack.c.l.b16 %v45
    %v85 = vpack.c.b16 %v70, %v69
    %v86 = vpack.c.b16 %v72, %v71
    %v87 = vpack.c.b16 %v74, %v73
    %v88 = vpack.c.b16 %v76, %v75
    %v89 = vpack.c.b16 %v78, %v77
    %v90 = vpack.c.b16 %v80, %v79
    %v91 = vpack.c.b16 %v82, %v81
    %v92 = vpack.c.b16 %v84, %v83
    %101 = vmatprep.subr.bf16.mxu0 0
    %102 = vmatpush1.bf16.msra.mxu0 %v85
    %103 = vmatprep.subr.bf16.mxu0 0
    %104 = vmatpush1.bf16.msra.mxu0 %v86
    %105 = vmatprep.subr.bf16.mxu0 0
    %106 = vmatpush1.bf16.msra.mxu0 %v87
    %107 = vmatprep.subr.bf16.mxu0 0
    %108 = vmatpush1.bf16.msra.mxu0 %v88
    %109 = vmatprep.subr.bf16.mxu0 0
    %110 = vmatpush1.bf16.msra.mxu0 %v89
    %111 = vmatprep.subr.bf16.mxu0 0
    %112 = vmatpush1.bf16.msra.mxu0 %v90
    %113 = vmatprep.subr.bf16.mxu0 0
    %114 = vmatpush1.bf16.msra.mxu0 %v91
    %115 = vmatprep.subr.bf16.mxu0 0
    %116 = vmatpush1.bf16.msra.mxu0 %v92
    %117 = vmatprep.subr.bf16.mxu0 0
    %118 = vmatpush1.bf16.msra.mxu0 0
    %119 = vmatprep.subr.bf16.mxu0 0
    %120 = vmatpush1.bf16.msra.mxu0 0
    %121 = vmatprep.subr.bf16.mxu0 0
    %122 = vmatpush1.bf16.msra.mxu0 0
    %123 = vmatprep.subr.bf16.mxu0 0
    %124 = vmatpush1.bf16.msra.mxu0 0
    %125 = vmatprep.subr.bf16.mxu0 0
    %126 = vmatpush1.bf16.msra.mxu0 0
    %127 = vmatprep.subr.bf16.mxu0 0
    %128 = vmatpush1.bf16.msra.mxu0 0
    %129 = vmatprep.subr.bf16.mxu0 0
    %130 = vmatpush1.bf16.msra.mxu0 0
    %131 = vmatprep.subr.bf16.mxu0 0
    %132 = vmatpush1.bf16.msra.mxu0 0
    %133 = vmatprep.mubr.bf16.mxu0 0
    %134 = vmatmul.mubr.bf16.gmra.mrb[0].mxu0 %v29
    %v135 = vpop.f32.mrb[0].mxu0
    %v136 = vadd.f32 %v51, %v135
    %v137 = vpop.f32.mrb[0].mxu0
    %v138 = vpop.f32.mrb[0].mxu0
    %v139 = vpop.f32.mrb[0].mxu0
    %140 = vdwg.mxu0
    %v141 = vmax.f32 %v136, 0.0
    %v142 = vpack.c.bf16 %v141, %v141
    %v143 = vld [vmem:[%s3] sm:$0xf]
    %v144 = vld [vmem:[%s3 + $0x4] sm:$0xf]
    %v145 = vld [vmem:[%s3 + $0x8] sm:$0xf]
    %v146 = vld [vmem:[%s3 + $0xc] sm:$0xf]
    %v147 = vld [vmem:[%s3 + $0x10] sm:$0xf]
    %v148 = vld [vmem:[%s3 + $0x14] sm:$0xf]
    %v149 = vld [vmem:[%s3 + $0x18] sm:$0xf]
    %v150 = vld [vmem:[%s3 + $0x1c] sm:$0xf]
    %v151 = vld [vmem:[%s3 + $0x20] sm:$0xf]
    %v152 = vld [vmem:[%s3 + $0x24] sm:$0xf]
    %v153 = vld [vmem:[%s3 + $0x28] sm:$0xf]
    %v154 = vld [vmem:[%s3 + $0x2c] sm:$0xf]
    %v155 = vld [vmem:[%s3 + $0x30] sm:$0xf]
    %v156 = vld [vmem:[%s3 + $0x34] sm:$0xf]
    %v157 = vld [vmem:[%s3 + $0x38] sm:$0xf]
    %v158 = vld [vmem:[%s3 + $0x3c] sm:$0xf]
    %v159 = vld [vmem:[%s4] sm:$0x1]
    %v161 = vlaneseq
    %v162 = vshrl.u32 %v161, 7
    %v163 = vsub.s32 0, %v162
    %v164 = vrot.slane %v159, %v163
    %v182 = vunpack.c.l.b16 %v143
    %v183 = vunpack.c.l.b16 %v144
    %v184 = vunpack.c.l.b16 %v145
    %v185 = vunpack.c.l.b16 %v146
    %v186 = vunpack.c.l.b16 %v147
    %v187 = vunpack.c.l.b16 %v148
    %v188 = vunpack.c.l.b16 %v149
    %v189 = vunpack.c.l.b16 %v150
    %v190 = vunpack.c.l.b16 %v151
    %v191 = vunpack.c.l.b16 %v152
    %v192 = vunpack.c.l.b16 %v153
    %v193 = vunpack.c.l.b16 %v154
    %v194 = vunpack.c.l.b16 %v155
    %v195 = vunpack.c.l.b16 %v156
    %v196 = vunpack.c.l.b16 %v157
    %v197 = vunpack.c.l.b16 %v158
    %v198 = vpack.c.b16 %v183, %v182
    %v199 = vpack.c.b16 %v185, %v184
    %v200 = vpack.c.b16 %v187, %v186
    %v201 = vpack.c.b16 %v189, %v188
    %v202 = vpack.c.b16 %v191, %v190
    %v203 = vpack.c.b16 %v193, %v192
    %v204 = vpack.c.b16 %v195, %v194
    %v205 = vpack.c.b16 %v197, %v196
    %214 = vmatprep.subr.bf16.mxu0 0
    %215 = vmatpush1.bf16.msra.mxu0 %v198
    %216 = vmatprep.subr.bf16.mxu0 0
    %217 = vmatpush1.bf16.msra.mxu0 %v199
    %218 = vmatprep.subr.bf16.mxu0 0
    %219 = vmatpush1.bf16.msra.mxu0 %v200
    %220 = vmatprep.subr.bf16.mxu0 0
    %221 = vmatpush1.bf16.msra.mxu0 %v201
    %222 = vmatprep.subr.bf16.mxu0 0
    %223 = vmatpush1.bf16.msra.mxu0 %v202
    %224 = vmatprep.subr.bf16.mxu0 0
    %225 = vmatpush1.bf16.msra.mxu0 %v203
    %226 = vmatprep.subr.bf16.mxu0 0
    %227 = vmatpush1.bf16.msra.mxu0 %v204
    %228 = vmatprep.subr.bf16.mxu0 0
    %229 = vmatpush1.bf16.msra.mxu0 %v205
    %230 = vmatprep.subr.bf16.mxu0 0
    %231 = vmatpush1.bf16.msra.mxu0 0
    %232 = vmatprep.subr.bf16.mxu0 0
    %233 = vmatpush1.bf16.msra.mxu0 0
    %234 = vmatprep.subr.bf16.mxu0 0
    %235 = vmatpush1.bf16.msra.mxu0 0
    %236 = vmatprep.subr.bf16.mxu0 0
    %237 = vmatpush1.bf16.msra.mxu0 0
    %238 = vmatprep.subr.bf16.mxu0 0
    %239 = vmatpush1.bf16.msra.mxu0 0
    %240 = vmatprep.subr.bf16.mxu0 0
    %241 = vmatpush1.bf16.msra.mxu0 0
    %242 = vmatprep.subr.bf16.mxu0 0
    %243 = vmatpush1.bf16.msra.mxu0 0
    %244 = vmatprep.subr.bf16.mxu0 0
    %245 = vmatpush1.bf16.msra.mxu0 0
    %246 = vmatprep.mubr.bf16.mxu0 0
    %247 = vmatmul.mubr.bf16.gmra.mrb[0].mxu0 %v142
    %v248 = vpop.f32.mrb[0].mxu0
    %v249 = vadd.f32 %v164, %v248
    %v250 = vpop.f32.mrb[0].mxu0
    %v251 = vpop.f32.mrb[0].mxu0
    %v252 = vpop.f32.mrb[0].mxu0
    %253 = vdwg.mxu0
    %v254 = vmax.f32 %v249, 0.0
    %v255 = vpack.c.bf16 %v254, %v254
    %v256 = vld [vmem:[%s5] sm:$0xf]
    %v257 = vld [vmem:[%s5 + $0x4] sm:$0xf]
    %v258 = vld [vmem:[%s5 + $0x8] sm:$0xf]
    %v259 = vld [vmem:[%s5 + $0xc] sm:$0xf]
    %v260 = vld [vmem:[%s5 + $0x10] sm:$0xf]
    %v261 = vld [vmem:[%s5 + $0x14] sm:$0xf]
    %v262 = vld [vmem:[%s5 + $0x18] sm:$0xf]
    %v263 = vld [vmem:[%s5 + $0x1c] sm:$0xf]
    %v264 = vld [vmem:[%s5 + $0x20] sm:$0xf]
    %v265 = vld [vmem:[%s5 + $0x24] sm:$0xf]
    %v266 = vld [vmem:[%s5 + $0x28] sm:$0xf]
    %v267 = vld [vmem:[%s5 + $0x2c] sm:$0xf]
    %v268 = vld [vmem:[%s5 + $0x30] sm:$0xf]
    %v269 = vld [vmem:[%s5 + $0x34] sm:$0xf]
    %v270 = vld [vmem:[%s5 + $0x38] sm:$0xf]
    %v271 = vld [vmem:[%s5 + $0x3c] sm:$0xf]
    %v272 = vld [vmem:[%s6] sm:$0x1]
    %v274 = vlaneseq
    %v275 = vshrl.u32 %v274, 7
    %v276 = vsub.s32 0, %v275
    %v277 = vrot.slane %v272, %v276
    %v295 = vunpack.c.l.b16 %v256
    %v296 = vunpack.c.l.b16 %v257
    %v297 = vunpack.c.l.b16 %v258
    %v298 = vunpack.c.l.b16 %v259
    %v299 = vunpack.c.l.b16 %v260
    %v300 = vunpack.c.l.b16 %v261
    %v301 = vunpack.c.l.b16 %v262
    %v302 = vunpack.c.l.b16 %v263
    %v303 = vunpack.c.l.b16 %v264
    %v304 = vunpack.c.l.b16 %v265
    %v305 = vunpack.c.l.b16 %v266
    %v306 = vunpack.c.l.b16 %v267
    %v307 = vunpack.c.l.b16 %v268
    %v308 = vunpack.c.l.b16 %v269
    %v309 = vunpack.c.l.b16 %v270
    %v310 = vunpack.c.l.b16 %v271
    %v311 = vpack.c.b16 %v296, %v295
    %v312 = vpack.c.b16 %v298, %v297
    %v313 = vpack.c.b16 %v300, %v299
    %v314 = vpack.c.b16 %v302, %v301
    %v315 = vpack.c.b16 %v304, %v303
    %v316 = vpack.c.b16 %v306, %v305
    %v317 = vpack.c.b16 %v308, %v307
    %v318 = vpack.c.b16 %v310, %v309
    %327 = vmatprep.subr.bf16.mxu0 0
    %328 = vmatpush1.bf16.msra.mxu0 %v311
    %329 = vmatprep.subr.bf16.mxu0 0
    %330 = vmatpush1.bf16.msra.mxu0 %v312
    %331 = vmatprep.subr.bf16.mxu0 0
    %332 = vmatpush1.bf16.msra.mxu0 %v313
    %333 = vmatprep.subr.bf16.mxu0 0
    %334 = vmatpush1.bf16.msra.mxu0 %v314
    %335 = vmatprep.subr.bf16.mxu0 0
    %336 = vmatpush1.bf16.msra.mxu0 %v315
    %337 = vmatprep.subr.bf16.mxu0 0
    %338 = vmatpush1.bf16.msra.mxu0 %v316
    %339 = vmatprep.subr.bf16.mxu0 0
    %340 = vmatpush1.bf16.msra.mxu0 %v317
    %341 = vmatprep.subr.bf16.mxu0 0
    %342 = vmatpush1.bf16.msra.mxu0 %v318
    %343 = vmatprep.subr.bf16.mxu0 0
    %344 = vmatpush1.bf16.msra.mxu0 0
    %345 = vmatprep.subr.bf16.mxu0 0
    %346 = vmatpush1.bf16.msra.mxu0 0
    %347 = vmatprep.subr.bf16.mxu0 0
    %348 = vmatpush1.bf16.msra.mxu0 0
    %349 = vmatprep.subr.bf16.mxu0 0
    %350 = vmatpush1.bf16.msra.mxu0 0
    %351 = vmatprep.subr.bf16.mxu0 0
    %352 = vmatpush1.bf16.msra.mxu0 0
    %353 = vmatprep.subr.bf16.mxu0 0
    %354 = vmatpush1.bf16.msra.mxu0 0
    %355 = vmatprep.subr.bf16.mxu0 0
    %356 = vmatpush1.bf16.msra.mxu0 0
    %357 = vmatprep.subr.bf16.mxu0 0
    %358 = vmatpush1.bf16.msra.mxu0 0
    %359 = vmatprep.mubr.bf16.mxu0 0
    %360 = vmatmul.mubr.bf16.gmra.mrb[0].mxu0 %v255
    %v361 = vpop.f32.mrb[0].mxu0
    %v362 = vadd.f32 %v277, %v361
    %v363 = vpop.f32.mrb[0].mxu0
    %v364 = vpop.f32.mrb[0].mxu0
    %v365 = vpop.f32.mrb[0].mxu0
    %366 = vdwg.mxu0
    %v367 = vxor.u32 %v362, 2147483648
    %v368 = vmul.f32 %v367, 1.442695
    %v369 = vpow.pop %v368
    %v370 = vadd.f32 %v369, 1.0
    %v371 = vrcp.pop %v370
    %v372 = vmul.f32 1.0, %v371
    %v373 = vmax.f32 %v372, %v28
    %vm374 = vcmask 523264
    %375 = vst.msk [vmem:[#allocation2] sm:$0xff] %vm374, %v373
    // Predicated region
    $region30: #{generator_forward.1} parent=1 // pred_check
      _
    $region31: #{generator_forward.1} parent=1 // pred_check_branch
      %377 = sbr.rel (0) target = $region33
    $region32: #{generator_forward.1} parent=1 // pred_region
      %s379 = ssub.s32 128, 128
      %380 = vsyncadd [#allocation3], %s379
      %s382 = sshll.u32 [#allocation2], 4
      %s383 = int_to_ptr.vmem [resolvable:$true] %s382
      %385 = dma.vmem_to_hbm [thread:$0]  %s383, 128, %s7, [#allocation3]
    $region33: #{generator_forward.1} parent=1 // pred_fallthru
      _
    // Predicated region
    $region34: #{generator_forward.1} parent=1 // pred_check
      _
    $region35: #{generator_forward.1} parent=1 // pred_check_branch
      %387 = sbr.rel (0) target = $region37
    $region36: #{generator_forward.1} parent=1 // pred_region
      %388 = dma.done [#allocation3], 128
    $region37: #{generator_forward.1} parent=1 // pred_fallthru
      _
    %389 = vsyncpa [#allocation3], 1

</llo_original>
